<compile_context>
chip_gen: v7x
topology: tpu7x:2x2x1
jax: 0.10.0
libtpu: 0.0.40
codegen_flags: <defaults>
</compile_context>

<pallas_src>
import numpy as np

import jax
import jax.numpy as jnp
from jax.experimental import pallas as pl
from jax.experimental.pallas import tpu as pltpu


def _dft2_matrix_hi_lo(H: int, W: int):
    """[Re | Im] of the ortho-scaled 2-D DFT operator as a bf16 hi/lo pair.

    F2D[(m*W+n), (k*W+l)] = exp(-2*pi*i*(k*m/H + l*n/W)) / sqrt(H*W); F2D is
    symmetric, so  y_flat = x_flat @ F2D  computes fft2(norm='ortho').
    Returned shape: (H*W, 2*H*W) each, M ≈ M_hi + M_lo with M_hi, M_lo in bf16.
    """
    fh = np.exp(-2j * np.pi * np.outer(np.arange(H), np.arange(H)) / H)
    fw = np.exp(-2j * np.pi * np.outer(np.arange(W), np.arange(W)) / W)
    f2d = np.kron(fh, fw) / np.sqrt(H * W)
    m = jnp.asarray(
        np.concatenate([f2d.real, f2d.imag], axis=1).astype(np.float32))
    m_hi = m.astype(jnp.bfloat16)
    m_lo = (m - m_hi.astype(jnp.float32)).astype(jnp.bfloat16)
    return m_hi, m_lo


def _fft2_abs_kernel(x_ref, mhi_ref, mlo_ref, o_ref):
    # x_ref: (TB, HW) f32 tile; mhi/mlo: (HW, 2*HW) bf16 hi/lo of [Re|Im] DFT matrix.
    hw = o_ref.shape[-1]
    x = x_ref[...]
    # Split-precision operands: x ≈ x_hi + x_lo (both bf16), accumulate in f32.
    x_hi = x.astype(jnp.bfloat16)
    x_lo = (x - x_hi.astype(jnp.float32)).astype(jnp.bfloat16)
    m_hi = mhi_ref[...]
    m_lo = mlo_ref[...]
    # 3 bf16 MXU passes ≈ full f32 accuracy (drops only the x_lo@m_lo term, ~2^-16 rel).
    y = jnp.dot(x_hi, m_hi, preferred_element_type=jnp.float32)
    y = y + jnp.dot(x_hi, m_lo, preferred_element_type=jnp.float32)
    y = y + jnp.dot(x_lo, m_hi, preferred_element_type=jnp.float32)
    re = y[:, :hw]          # split at a 128-lane boundary (hw = 256)
    im = y[:, hw:]
    # |Y|; ortho scale already folded into the DFT matrices.
    o_ref[...] = jnp.sqrt(re * re + im * im).astype(o_ref.dtype)


def fourier_predictor_forward(x: jax.Array) -> jax.Array:
    """F.forward(x): abs(fft2(x, norm='ortho')) over the last two axes.

    x: (B, C, T, H, W) float32. Returns same shape, float32.
    """
    B, C, T, H, W = x.shape
    N = B * C * T
    HW = H * W

    m_hi, m_lo = _dft2_matrix_hi_lo(H, W)
    xf = x.astype(jnp.float32).reshape(N, HW)

    # Batch tile: cap at 1024 rows; guarantee >= 2 grid steps whenever N allows it
    # so a 2-TensorCore chip (v7x) can shard the "parallel" axis across cores.
    MAX_TB = 1024
    half = -(-N // 2)                       # ceil(N / 2)
    tb = min(MAX_TB, max(8, ((half + 7) // 8) * 8))
    grid = (pl.cdiv(N, tb),)                # ragged last block handled by Pallas

    out = pl.pallas_call(
        _fft2_abs_kernel,
        out_shape=jax.ShapeDtypeStruct((N, HW), jnp.float32),
        grid=grid,
        in_specs=[
            pl.BlockSpec((tb, HW), lambda i: (i, 0)),
            pl.BlockSpec((HW, 2 * HW), lambda i: (0, 0)),   # constant -> stays VMEM-resident
            pl.BlockSpec((HW, 2 * HW), lambda i: (0, 0)),
        ],
        out_specs=pl.BlockSpec((tb, HW), lambda i: (i, 0)),
        compiler_params=pltpu.CompilerParams(
            dimension_semantics=("parallel",)),
    )(xf, m_hi, m_lo)

    return out.reshape(B, C, T, H, W)


if __name__ == "__main__":
    # Small video-shaped input consistent with the module: (B, C, T, H, W)
    key = jax.random.PRNGKey(0)
    x = jax.random.normal(key, (2, 1, 8, 16, 16), dtype=jnp.float32)

    y = fourier_predictor_forward(x)
    y = jax.block_until_ready(y)

    # Reference check against jnp.fft (glue-only; the hot path ran in Pallas).
    ref = jnp.abs(jnp.fft.fft2(x, axes=(-2, -1), norm="ortho")).astype(jnp.float32)
    assert y.shape == x.shape and y.dtype == jnp.float32
    np.testing.assert_allclose(np.asarray(y), np.asarray(ref), rtol=1e-3, atol=1e-3)

    print("KERNEL_OK")
</pallas_src>

<mosaic_0001>
module attributes {stable_mosaic.version = 11 : i64} {
  func.func @_fft2_abs_kernel(%arg0: i32, %arg1: memref<8x256xf32, #tpu.memory_space<vmem>>, %arg2: memref<256x512xbf16, #tpu.memory_space<vmem>>, %arg3: memref<256x512xbf16, #tpu.memory_space<vmem>>, %arg4: memref<8x256xf32, #tpu.memory_space<vmem>>) attributes {dimension_semantics = [#tpu.dimension_semantics<parallel>], iteration_bounds = array<i64: 2>, scalar_prefetch = 0 : i64, scratch_operands = 0 : i64, tpu.core_type = #tpu.core_type<tc>, window_params = [{transform_indices = @transform_0, window_bounds = array<i64: 8, 256>}, {pipeline_mode = #tpu.pipeline_mode<synchronous>, transform_indices = @transform_1, window_bounds = array<i64: 256, 512>}, {pipeline_mode = #tpu.pipeline_mode<synchronous>, transform_indices = @transform_2, window_bounds = array<i64: 256, 512>}, {transform_indices = @transform_3, window_bounds = array<i64: 8, 256>}]} {
    %c0 = arith.constant 0 : index
    %c0_0 = arith.constant 0 : index
    %0 = vector.load %arg1[%c0, %c0_0] : memref<8x256xf32, #tpu.memory_space<vmem>>, vector<8x256xf32>
    %1 = arith.truncf %0 : vector<8x256xf32> to vector<8x256xbf16>
    %2 = arith.extf %1 : vector<8x256xbf16> to vector<8x256xf32>
    %3 = arith.subf %0, %2 : vector<8x256xf32>
    %4 = arith.truncf %3 : vector<8x256xf32> to vector<8x256xbf16>
    %c0_1 = arith.constant 0 : index
    %c0_2 = arith.constant 0 : index
    %5 = vector.load %arg2[%c0_1, %c0_2] : memref<256x512xbf16, #tpu.memory_space<vmem>>, vector<256x512xbf16>
    %c0_3 = arith.constant 0 : index
    %c0_4 = arith.constant 0 : index
    %6 = vector.load %arg3[%c0_3, %c0_4] : memref<256x512xbf16, #tpu.memory_space<vmem>>, vector<256x512xbf16>
    %cst = arith.constant dense<0.000000e+00> : vector<8x512xf32>
    %7 = tpu.matmul %1, %5, %cst {dimension_numbers = #tpu.dot_dimension_numbers<[1], [0], [0], [1], [0, 0, 1, 1], [], []>} : vector<8x256xbf16>, vector<256x512xbf16>, vector<8x512xf32> -> vector<8x512xf32>
    %cst_5 = arith.constant dense<0.000000e+00> : vector<8x512xf32>
    %8 = tpu.matmul %1, %6, %cst_5 {dimension_numbers = #tpu.dot_dimension_numbers<[1], [0], [0], [1], [0, 0, 1, 1], [], []>} : vector<8x256xbf16>, vector<256x512xbf16>, vector<8x512xf32> -> vector<8x512xf32>
    %9 = arith.addf %7, %8 : vector<8x512xf32>
    %cst_6 = arith.constant dense<0.000000e+00> : vector<8x512xf32>
    %10 = tpu.matmul %4, %5, %cst_6 {dimension_numbers = #tpu.dot_dimension_numbers<[1], [0], [0], [1], [0, 0, 1, 1], [], []>} : vector<8x256xbf16>, vector<256x512xbf16>, vector<8x512xf32> -> vector<8x512xf32>
    %11 = arith.addf %9, %10 : vector<8x512xf32>
    %12 = vector.extract_strided_slice %11 {offsets = [0, 0], sizes = [8, 256], strides = [1, 1]} : vector<8x512xf32> to vector<8x256xf32>
    %13 = vector.extract_strided_slice %11 {offsets = [0, 256], sizes = [8, 256], strides = [1, 1]} : vector<8x512xf32> to vector<8x256xf32>
    %14 = arith.mulf %12, %12 : vector<8x256xf32>
    %15 = arith.mulf %13, %13 : vector<8x256xf32>
    %16 = arith.addf %14, %15 : vector<8x256xf32>
    %17 = math.sqrt %16 : vector<8x256xf32>
    %c0_7 = arith.constant 0 : index
    %c0_8 = arith.constant 0 : index
    %18 = vector.load %arg4[%c0_7, %c0_8] : memref<8x256xf32, #tpu.memory_space<vmem>>, vector<8x256xf32>
    tpu.vector_store %arg4[%c0_7, %c0_8], %17 {strides = array<i32>} : memref<8x256xf32, #tpu.memory_space<vmem>>, vector<8x256xf32>,
    return
  }
  func.func @transform_0(%arg0: i32) -> (i32, i32) {
    %c0_i32 = arith.constant 0 : i32
    %c0_i32_0 = arith.constant 0 : i32
    return %arg0, %c0_i32 : i32, i32
  }
  func.func @transform_1(%arg0: i32) -> (i32, i32) {
    %c0_i32 = arith.constant 0 : i32
    %c0_i32_0 = arith.constant 0 : i32
    %c0_i32_1 = arith.constant 0 : i32
    return %c0_i32, %c0_i32_0 : i32, i32
  }
  func.func @transform_2(%arg0: i32) -> (i32, i32) {
    %c0_i32 = arith.constant 0 : i32
    %c0_i32_0 = arith.constant 0 : i32
    %c0_i32_1 = arith.constant 0 : i32
    return %c0_i32, %c0_i32_0 : i32, i32
  }
  func.func @transform_3(%arg0: i32) -> (i32, i32) {
    %c0_i32 = arith.constant 0 : i32
    %c0_i32_0 = arith.constant 0 : i32
    return %arg0, %c0_i32 : i32, i32
  }
}

</mosaic_0001>

<llo_original>
// kernel: tpu_custom_call.1
$region0: #{tpu_custom_call.1}
  #allocation0 [shape = 'u32[]', space=smem, size = 0x4, offset = 0x4, fixed_abs, tag = 'smem constant byte address 0x4 - core index']
  #allocation1 [shape = 'u32[144,128]{1,0:T(1,128)}', space=vmem, size = 0x12000, scoped, tag = 'internal scratch']
  %s0 = inlined_call_operand.hbm [shape: f32[16,256], index: 0, kind: input, shape index: {}]
  %s1 = inlined_call_operand.hbm [shape: bf16[256,512], index: 1, kind: input, shape index: {}]
  %s2 = inlined_call_operand.hbm [shape: bf16[256,512], index: 2, kind: input, shape index: {}]
  %s3 = inlined_call_operand.hbm [shape: f32[16,256], index: 3, kind: output, shape index: {}]
  %s4 = sld [smem:[#allocation0]]
  $region57: #{tpu_custom_call.1} parent=0
    _
  %s6 = ssub.s32 1, %s4
  %s7 = scalar_select 0, %s6, %s4
  $region1: #{tpu_custom_call.1} parent=0
    #allocation2 [shape = 'u8[16384]{0}', space=vmem, size = 0x4000, scoped, tag = 'input window, operand 0']
    #allocation3 [shape = 's32[2]{0}', space=sflag, size = 0x8, scoped, tag = 'scoped memory for tpu_custom_call.1']
    #allocation4 [shape = 's32[2]{0}', space=sflag, size = 0x8, scoped, tag = 'scoped memory for tpu_custom_call.1']
    #allocation5 [shape = 'u8[262144]{0}', space=vmem, size = 0x40000, scoped, tag = 'input window, operand 1, single buffered']
    #allocation6 [shape = 's32[1]{0}', space=sflag, size = 0x4, scoped, tag = 'scoped memory for tpu_custom_call.1']
    #allocation7 [shape = 'u8[262144]{0}', space=vmem, size = 0x40000, scoped, tag = 'input window, operand 2, single buffered']
    #allocation8 [shape = 'u8[16384]{0}', space=vmem, size = 0x4000, scoped, tag = 'output window, operand 0']
    %8 = vsyncpa [#allocation3], 0
    %s9 = scalar_lea.sflag [#allocation3], 1
    %10 = vsyncpa %s9, 0
    %11 = vsyncpa [#allocation6], 0
    %12 = vsyncpa [#allocation4], 0
    %s13 = scalar_lea.sflag [#allocation4], 1
    %14 = vsyncpa %s13, 0
    loop: start=0, step=1, limit=4
    $region2: #{tpu_custom_call.1} parent=1 // loop_pre_header
      _
    $region3: #{tpu_custom_call.1} parent=1 // loop_header
      %s16 = sphi 0, %s20
      %p17 = scmp.ge.s32.totalorder %s16, 4
      %s26 = sphi 0, %s28
      %s29 = sphi 0, %s26
      %s30 = sphi 0, %s29
      %s46 = sphi 0, %s30
      %s50 = sphi 0, %s50
      %s52 = sphi 0, %s50
      %s53 = sphi 0, %s52
      %s67 = sphi 0, %s53
      %s71 = sphi 0, %s71
      %s73 = sphi 0, %s71
      %s74 = sphi 0, %s73
      %s88 = sphi 0, %s74
      %s94 = sphi 0, %s96
      %s97 = sphi 0, %s94
      %s98 = sphi 0, %s97
      %s114 = sphi 0, %s98
    $region4: #{tpu_custom_call.1} parent=1 // loop_header_branch
      %19 = sbr.rel (%p17) target = $region8
    $region5: #{tpu_custom_call.1} parent=1 // loop_body
      %s21 = ssub.s32 %s16, 1
      %s22 = ssub.s32 %s16, 2
      %s23 = sadd.s32 %s16, 1
      %s24 = ssub.s32 %s16, %s23
      %p25 = scmp.eq.s32.totalorder %s24, 0
      %s27 = sadd.s32 %s26, 1
      %s28 = scalar_select %p25, %s26, %s27
      %p31 = pneg %p25
      %p32 = scmp.eq.s32.totalorder %s16, 1
      %p33 = por %p31, %p32
      %p34 = scmp.ne.s32.totalorder %s26, %s29
      %p35 = scmp.eq.s32.totalorder %s16, 0
      %p36 = por %p34, %p35
      %p37 = scmp.ne.s32.totalorder %s26, %s29
      %p38 = scmp.eq.s32.totalorder %s21, 1
      %p39 = por %p37, %p38
      %p40 = scmp.ne.s32.totalorder %s29, %s30
      %p41 = scmp.eq.s32.totalorder %s21, 0
      %p42 = por %p40, %p41
      %p43 = scmp.ne.s32.totalorder %s29, %s30
      %p44 = scmp.eq.s32.totalorder %s22, 1
      %p45 = por %p43, %p44
      %p47 = scmp.ne.s32.totalorder %s30, %s46
      %p48 = scmp.eq.s32.totalorder %s22, 0
      %p49 = por %p47, %p48
      %s51 = sadd.s32 %s50, 1
      %p54 = scmp.eq.s32.totalorder %s16, 1
      %p55 = scmp.ne.s32.totalorder %s50, %s52
      %p56 = scmp.eq.s32.totalorder %s16, 0
      %p57 = por %p55, %p56
      %p58 = scmp.ne.s32.totalorder %s50, %s52
      %p59 = scmp.eq.s32.totalorder %s21, 1
      %p60 = por %p58, %p59
      %p61 = scmp.ne.s32.totalorder %s52, %s53
      %p62 = scmp.eq.s32.totalorder %s21, 0
      %p63 = por %p61, %p62
      %p64 = scmp.ne.s32.totalorder %s52, %s53
      %p65 = scmp.eq.s32.totalorder %s22, 1
      %p66 = por %p64, %p65
      %p68 = scmp.ne.s32.totalorder %s53, %s67
      %p69 = scmp.eq.s32.totalorder %s22, 0
      %p70 = por %p68, %p69
      %s72 = sadd.s32 %s71, 1
      %p75 = scmp.eq.s32.totalorder %s16, 1
      %p76 = scmp.ne.s32.totalorder %s71, %s73
      %p77 = scmp.eq.s32.totalorder %s16, 0
      %p78 = por %p76, %p77
      %p79 = scmp.ne.s32.totalorder %s71, %s73
      %p80 = scmp.eq.s32.totalorder %s21, 1
      %p81 = por %p79, %p80
      %p82 = scmp.ne.s32.totalorder %s73, %s74
      %p83 = scmp.eq.s32.totalorder %s21, 0
      %p84 = por %p82, %p83
      %p85 = scmp.ne.s32.totalorder %s73, %s74
      %p86 = scmp.eq.s32.totalorder %s22, 1
      %p87 = por %p85, %p86
      %p89 = scmp.ne.s32.totalorder %s74, %s88
      %p90 = scmp.eq.s32.totalorder %s22, 0
      %p91 = por %p89, %p90
      %s92 = ssub.s32 %s16, %s23
      %p93 = scmp.eq.s32.totalorder %s92, 0
      %s95 = sadd.s32 %s94, 1
      %s96 = scalar_select %p93, %s94, %s95
      %p99 = pneg %p93
      %p100 = scmp.eq.s32.totalorder %s16, 1
      %p101 = por %p99, %p100
      %p102 = scmp.ne.s32.totalorder %s94, %s97
      %p103 = scmp.eq.s32.totalorder %s16, 0
      %p104 = por %p102, %p103
      %p105 = scmp.ne.s32.totalorder %s94, %s97
      %p106 = scmp.eq.s32.totalorder %s21, 1
      %p107 = por %p105, %p106
      %p108 = scmp.ne.s32.totalorder %s97, %s98
      %p109 = scmp.eq.s32.totalorder %s21, 0
      %p110 = por %p108, %p109
      %p111 = scmp.ne.s32.totalorder %s97, %s98
      %p112 = scmp.eq.s32.totalorder %s22, 1
      %p113 = por %p111, %p112
      %p115 = scmp.ne.s32.totalorder %s98, %s114
      %p116 = scmp.eq.s32.totalorder %s22, 0
      %p117 = por %p115, %p116
      %p118 = scmp.le.s32.totalorder 1, %s16
      %p119 = scmp.lt.s32.totalorder %s16, 3
      %p120 = pnand %p118, %p119
      %p121 = pneg %p120
      // Predicated region
      $region9: #{tpu_custom_call.1} parent=5 // pred_check
        _
      $region10: #{tpu_custom_call.1} parent=5 // pred_check_branch
        %123 = sbr.rel (%p120) target = $region12
      $region11: #{tpu_custom_call.1} parent=5 // pred_region
        %s124 = ssub.s32 %s16, 1
        // Predicated region
        $region13: #{tpu_custom_call.1} parent=11 // pred_check
          %p125 = pneg %p63
        $region14: #{tpu_custom_call.1} parent=11 // pred_check_branch
          %127 = sbr.rel (%p125) target = $region16
        $region15: #{tpu_custom_call.1} parent=11 // pred_region
          %s129 = ssub.s32 8192, 8192
          %130 = vsyncadd [#allocation6], %s129
          %s131 = sshll.u32 [#allocation5], 4
          %s132 = int_to_ptr.vmem [resolvable:$true] %s131
          %137 = dma.hbm_to_vmem [thread:$0]  %s1, 8192, %s132, [#allocation6], 256, 256, 16
        $region16: #{tpu_custom_call.1} parent=11 // pred_fallthru
          _
        // Predicated region
        $region17: #{tpu_custom_call.1} parent=11 // pred_check
          %p138 = pneg %p84
        $region18: #{tpu_custom_call.1} parent=11 // pred_check_branch
          %140 = sbr.rel (%p138) target = $region20
        $region19: #{tpu_custom_call.1} parent=11 // pred_region
          %s142 = ssub.s32 8192, 8192
          %143 = vsyncadd [#allocation6], %s142
          %s144 = sshll.u32 [#allocation7], 4
          %s145 = int_to_ptr.vmem [resolvable:$true] %s144
          %150 = dma.hbm_to_vmem [thread:$0]  %s2, 8192, %s145, [#allocation6], 256, 256, 16
        $region20: #{tpu_custom_call.1} parent=11 // pred_fallthru
          _
      $region12: #{tpu_custom_call.1} parent=5 // pred_fallthru
        _
      %p151 = scmp.lt.s32.totalorder %s16, 2
      // Predicated region
      $region21: #{tpu_custom_call.1} parent=5 // pred_check
        %p152 = pneg %p151
      $region22: #{tpu_custom_call.1} parent=5 // pred_check_branch
        %154 = sbr.rel (%p152) target = $region24
      $region23: #{tpu_custom_call.1} parent=5 // pred_region
        // Predicated region
        $region25: #{tpu_custom_call.1} parent=23 // pred_check
          %p155 = pneg %p36
        $region26: #{tpu_custom_call.1} parent=23 // pred_check_branch
          %157 = sbr.rel (%p155) target = $region28
        $region27: #{tpu_custom_call.1} parent=23 // pred_region
          %s158 = sand.u32 %s26, 1
          %s159 = scalar_lea.sflag [#allocation3], %s158
          %s160 = sand.u32 %s26, 1
          %s161 = smul.addr %s160, 16
          %s162 = scalar_lea.vmem [#allocation2], %s161
          %s164 = ssub.s32 256, 256
          %165 = vsyncadd %s159, %s164
          %s166 = smul.addr %s16, 2
          %s167 = smul.addr %s166, 128
          %s168 = scalar_lea.hbm %s0, %s167
          %s170 = sshll.u32 %s162, 4
          %s171 = int_to_ptr.vmem [resolvable:$true] %s170
          %173 = dma.hbm_to_vmem [thread:$0]  %s168, 256, %s171, %s159
        $region28: #{tpu_custom_call.1} parent=23 // pred_fallthru
          _
      $region24: #{tpu_custom_call.1} parent=5 // pred_fallthru
        _
      %p174 = scmp.le.s32.totalorder 1, %s16
      %p175 = scmp.lt.s32.totalorder %s16, 3
      %p176 = pnand %p174, %p175
      %p177 = pneg %p176
      // Predicated region
      $region29: #{tpu_custom_call.1} parent=5 // pred_check
        _
      $region30: #{tpu_custom_call.1} parent=5 // pred_check_branch
        %179 = sbr.rel (%p176) target = $region32
      $region31: #{tpu_custom_call.1} parent=5 // pred_region
        %s180 = ssub.s32 %s16, 1
        %s181 = sand.u32 %s29, 1
        %s182 = scalar_lea.sflag [#allocation3], %s181
        %s183 = sand.u32 %s29, 1
        %s184 = smul.addr %s183, 16
        %s185 = scalar_lea.vmem [#allocation2], %s184
        // Predicated region
        $region33: #{tpu_custom_call.1} parent=31 // pred_check
          %p186 = pneg %p42
        $region34: #{tpu_custom_call.1} parent=31 // pred_check_branch
          %188 = sbr.rel (%p186) target = $region36
        $region35: #{tpu_custom_call.1} parent=31 // pred_region
          %189 = dma.done %s182, 256
        $region36: #{tpu_custom_call.1} parent=31 // pred_fallthru
          _
        // Predicated region
        $region37: #{tpu_custom_call.1} parent=31 // pred_check
          %p190 = pneg %p63
        $region38: #{tpu_custom_call.1} parent=31 // pred_check_branch
          %192 = sbr.rel (%p190) target = $region40
        $region39: #{tpu_custom_call.1} parent=31 // pred_region
          %193 = dma.done [#allocation6], 8192
        $region40: #{tpu_custom_call.1} parent=31 // pred_fallthru
          _
        // Predicated region
        $region41: #{tpu_custom_call.1} parent=31 // pred_check
          %p194 = pneg %p84
        $region42: #{tpu_custom_call.1} parent=31 // pred_check_branch
          %196 = sbr.rel (%p194) target = $region44
        $region43: #{tpu_custom_call.1} parent=31 // pred_region
          %197 = dma.done [#allocation6], 8192
        $region44: #{tpu_custom_call.1} parent=31 // pred_fallthru
          _
        %s198 = sand.u32 %s29, 1
        %s199 = scalar_lea.sflag [#allocation3], %s198
        %s200 = sand.u32 %s29, 1
        %s201 = smul.addr %s200, 16
        %s202 = scalar_lea.vmem [#allocation2], %s201
        %p203 = pneg %p42
        %p204 = pneg %p39
        %p205 = pneg %p63
        %p206 = pneg %p60
        %p207 = pneg %p84
        %p208 = pneg %p81
        %p209 = pneg %p110
        %p210 = pneg %p107
        %s211 = sand.u32 %s97, 1
        %s212 = scalar_lea.sflag [#allocation4], %s211
        %s213 = sand.u32 %s97, 1
        %s214 = smul.addr %s213, 16
        %s215 = scalar_lea.vmem [#allocation8], %s214
        %v216 = vld [vmem:[%s185] sm:$0xff]
        %v217 = vld [vmem:[%s185 + $0x8] sm:$0xff]
        %v218 = vpack.c.bf16 %v216, %v216
        %v219 = vpack.c.bf16 %v217, %v217
        %v220 = vunpack.c.l.bf16 %v218
        %v221 = vunpack.c.l.bf16 %v219
        %v222 = vsub.f32 %v216, %v220
        %v223 = vsub.f32 %v217, %v221
        %v224 = vpack.c.bf16 %v222, %v222
        %v225 = vpack.c.bf16 %v223, %v223
        %v226 = vld [vmem:[#allocation5] sm:$0xff]
        %v227 = vld [vmem:[#allocation5 + $0x8] sm:$0xff]
        %v228 = vld [vmem:[#allocation5 + $0x10] sm:$0xff]
        %v229 = vld [vmem:[#allocation5 + $0x18] sm:$0xff]
        %v230 = vld [vmem:[#allocation5 + $0x20] sm:$0xff]
        %v231 = vld [vmem:[#allocation5 + $0x28] sm:$0xff]
        %v232 = vld [vmem:[#allocation5 + $0x30] sm:$0xff]
        %v233 = vld [vmem:[#allocation5 + $0x38] sm:$0xff]
        %v234 = vld [vmem:[#allocation5 + $0x40] sm:$0xff]
        %v235 = vld [vmem:[#allocation5 + $0x48] sm:$0xff]
        %v236 = vld [vmem:[#allocation5 + $0x50] sm:$0xff]
        %v237 = vld [vmem:[#allocation5 + $0x58] sm:$0xff]
        %v238 = vld [vmem:[#allocation5 + $0x60] sm:$0xff]
        %v239 = vld [vmem:[#allocation5 + $0x68] sm:$0xff]
        %v240 = vld [vmem:[#allocation5 + $0x70] sm:$0xff]
        %v241 = vld [vmem:[#allocation5 + $0x78] sm:$0xff]
        %v242 = vld [vmem:[#allocation5 + $0x80] sm:$0xff]
        %v243 = vld [vmem:[#allocation5 + $0x88] sm:$0xff]
        %v244 = vld [vmem:[#allocation5 + $0x90] sm:$0xff]
        %v245 = vld [vmem:[#allocation5 + $0x98] sm:$0xff]
        %v246 = vld [vmem:[#allocation5 + $0xa0] sm:$0xff]
        %v247 = vld [vmem:[#allocation5 + $0xa8] sm:$0xff]
        %v248 = vld [vmem:[#allocation5 + $0xb0] sm:$0xff]
        %v249 = vld [vmem:[#allocation5 + $0xb8] sm:$0xff]
        %v250 = vld [vmem:[#allocation5 + $0xc0] sm:$0xff]
        %v251 = vld [vmem:[#allocation5 + $0xc8] sm:$0xff]
        %v252 = vld [vmem:[#allocation5 + $0xd0] sm:$0xff]
        %v253 = vld [vmem:[#allocation5 + $0xd8] sm:$0xff]
        %v254 = vld [vmem:[#allocation5 + $0xe0] sm:$0xff]
        %v255 = vld [vmem:[#allocation5 + $0xe8] sm:$0xff]
        %v256 = vld [vmem:[#allocation5 + $0xf0] sm:$0xff]
        %v257 = vld [vmem:[#allocation5 + $0xf8] sm:$0xff]
        %v258 = vld [vmem:[#allocation5 + $0x100] sm:$0xff]
        %v259 = vld [vmem:[#allocation5 + $0x108] sm:$0xff]
        %v260 = vld [vmem:[#allocation5 + $0x110] sm:$0xff]
        %v261 = vld [vmem:[#allocation5 + $0x118] sm:$0xff]
        %v262 = vld [vmem:[#allocation5 + $0x120] sm:$0xff]
        %v263 = vld [vmem:[#allocation5 + $0x128] sm:$0xff]
        %v264 = vld [vmem:[#allocation5 + $0x130] sm:$0xff]
        %v265 = vld [vmem:[#allocation5 + $0x138] sm:$0xff]
        %v266 = vld [vmem:[#allocation5 + $0x140] sm:$0xff]
        %v267 = vld [vmem:[#allocation5 + $0x148] sm:$0xff]
        %v268 = vld [vmem:[#allocation5 + $0x150] sm:$0xff]
        %v269 = vld [vmem:[#allocation5 + $0x158] sm:$0xff]
        %v270 = vld [vmem:[#allocation5 + $0x160] sm:$0xff]
        %v271 = vld [vmem:[#allocation5 + $0x168] sm:$0xff]
        %v272 = vld [vmem:[#allocation5 + $0x170] sm:$0xff]
        %v273 = vld [vmem:[#allocation5 + $0x178] sm:$0xff]
        %v274 = vld [vmem:[#allocation5 + $0x180] sm:$0xff]
        %v275 = vld [vmem:[#allocation5 + $0x188] sm:$0xff]
        %v276 = vld [vmem:[#allocation5 + $0x190] sm:$0xff]
        %v277 = vld [vmem:[#allocation5 + $0x198] sm:$0xff]
        %v278 = vld [vmem:[#allocation5 + $0x1a0] sm:$0xff]
        %v279 = vld [vmem:[#allocation5 + $0x1a8] sm:$0xff]
        %v280 = vld [vmem:[#allocation5 + $0x1b0] sm:$0xff]
        %v281 = vld [vmem:[#allocation5 + $0x1b8] sm:$0xff]
        %v282 = vld [vmem:[#allocation5 + $0x1c0] sm:$0xff]
        %v283 = vld [vmem:[#allocation5 + $0x1c8] sm:$0xff]
        %v284 = vld [vmem:[#allocation5 + $0x1d0] sm:$0xff]
        %v285 = vld [vmem:[#allocation5 + $0x1d8] sm:$0xff]
        %v286 = vld [vmem:[#allocation5 + $0x1e0] sm:$0xff]
        %v287 = vld [vmem:[#allocation5 + $0x1e8] sm:$0xff]
        %v288 = vld [vmem:[#allocation5 + $0x1f0] sm:$0xff]
        %v289 = vld [vmem:[#allocation5 + $0x1f8] sm:$0xff]
        %v290 = vld [vmem:[#allocation7] sm:$0xff]
        %v291 = vld [vmem:[#allocation7 + $0x8] sm:$0xff]
        %v292 = vld [vmem:[#allocation7 + $0x10] sm:$0xff]
        %v293 = vld [vmem:[#allocation7 + $0x18] sm:$0xff]
        %v294 = vld [vmem:[#allocation7 + $0x20] sm:$0xff]
        %v295 = vld [vmem:[#allocation7 + $0x28] sm:$0xff]
        %v296 = vld [vmem:[#allocation7 + $0x30] sm:$0xff]
        %v297 = vld [vmem:[#allocation7 + $0x38] sm:$0xff]
        %v298 = vld [vmem:[#allocation7 + $0x40] sm:$0xff]
        %v299 = vld [vmem:[#allocation7 + $0x48] sm:$0xff]
        %v300 = vld [vmem:[#allocation7 + $0x50] sm:$0xff]
        %v301 = vld [vmem:[#allocation7 + $0x58] sm:$0xff]
        %v302 = vld [vmem:[#allocation7 + $0x60] sm:$0xff]
        %v303 = vld [vmem:[#allocation7 + $0x68] sm:$0xff]
        %v304 = vld [vmem:[#allocation7 + $0x70] sm:$0xff]
        %v305 = vld [vmem:[#allocation7 + $0x78] sm:$0xff]
        %v306 = vld [vmem:[#allocation7 + $0x80] sm:$0xff]
        %v307 = vld [vmem:[#allocation7 + $0x88] sm:$0xff]
        %v308 = vld [vmem:[#allocation7 + $0x90] sm:$0xff]
        %v309 = vld [vmem:[#allocation7 + $0x98] sm:$0xff]
        %v310 = vld [vmem:[#allocation7 + $0xa0] sm:$0xff]
        %v311 = vld [vmem:[#allocation7 + $0xa8] sm:$0xff]
        %v312 = vld [vmem:[#allocation7 + $0xb0] sm:$0xff]
        %v313 = vld [vmem:[#allocation7 + $0xb8] sm:$0xff]
        %v314 = vld [vmem:[#allocation7 + $0xc0] sm:$0xff]
        %v315 = vld [vmem:[#allocation7 + $0xc8] sm:$0xff]
        %v316 = vld [vmem:[#allocation7 + $0xd0] sm:$0xff]
        %v317 = vld [vmem:[#allocation7 + $0xd8] sm:$0xff]
        %v318 = vld [vmem:[#allocation7 + $0xe0] sm:$0xff]
        %v319 = vld [vmem:[#allocation7 + $0xe8] sm:$0xff]
        %v320 = vld [vmem:[#allocation7 + $0xf0] sm:$0xff]
        %v321 = vld [vmem:[#allocation7 + $0xf8] sm:$0xff]
        %v322 = vld [vmem:[#allocation7 + $0x100] sm:$0xff]
        %v323 = vld [vmem:[#allocation7 + $0x108] sm:$0xff]
        %v324 = vld [vmem:[#allocation7 + $0x110] sm:$0xff]
        %v325 = vld [vmem:[#allocation7 + $0x118] sm:$0xff]
        %v326 = vld [vmem:[#allocation7 + $0x120] sm:$0xff]
        %v327 = vld [vmem:[#allocation7 + $0x128] sm:$0xff]
        %v328 = vld [vmem:[#allocation7 + $0x130] sm:$0xff]
        %v329 = vld [vmem:[#allocation7 + $0x138] sm:$0xff]
        %v330 = vld [vmem:[#allocation7 + $0x140] sm:$0xff]
        %v331 = vld [vmem:[#allocation7 + $0x148] sm:$0xff]
        %v332 = vld [vmem:[#allocation7 + $0x150] sm:$0xff]
        %v333 = vld [vmem:[#allocation7 + $0x158] sm:$0xff]
        %v334 = vld [vmem:[#allocation7 + $0x160] sm:$0xff]
        %v335 = vld [vmem:[#allocation7 + $0x168] sm:$0xff]
        %v336 = vld [vmem:[#allocation7 + $0x170] sm:$0xff]
        %v337 = vld [vmem:[#allocation7 + $0x178] sm:$0xff]
        %v338 = vld [vmem:[#allocation7 + $0x180] sm:$0xff]
        %v339 = vld [vmem:[#allocation7 + $0x188] sm:$0xff]
        %v340 = vld [vmem:[#allocation7 + $0x190] sm:$0xff]
        %v341 = vld [vmem:[#allocation7 + $0x198] sm:$0xff]
        %v342 = vld [vmem:[#allocation7 + $0x1a0] sm:$0xff]
        %v343 = vld [vmem:[#allocation7 + $0x1a8] sm:$0xff]
        %v344 = vld [vmem:[#allocation7 + $0x1b0] sm:$0xff]
        %v345 = vld [vmem:[#allocation7 + $0x1b8] sm:$0xff]
        %v346 = vld [vmem:[#allocation7 + $0x1c0] sm:$0xff]
        %v347 = vld [vmem:[#allocation7 + $0x1c8] sm:$0xff]
        %v348 = vld [vmem:[#allocation7 + $0x1d0] sm:$0xff]
        %v349 = vld [vmem:[#allocation7 + $0x1d8] sm:$0xff]
        %v350 = vld [vmem:[#allocation7 + $0x1e0] sm:$0xff]
        %v351 = vld [vmem:[#allocation7 + $0x1e8] sm:$0xff]
        %v352 = vld [vmem:[#allocation7 + $0x1f0] sm:$0xff]
        %v353 = vld [vmem:[#allocation7 + $0x1f8] sm:$0xff]
        %v418 = vunpack.c.l.b16 %v290
        %v419 = vunpack.c.h.b16 %v290
        %v420 = vunpack.c.l.b16 %v291
        %v421 = vunpack.c.h.b16 %v291
        %v422 = vunpack.c.l.b16 %v292
        %v423 = vunpack.c.h.b16 %v292
        %v424 = vunpack.c.l.b16 %v293
        %v425 = vunpack.c.h.b16 %v293
        %v426 = vunpack.c.l.b16 %v294
        %v427 = vunpack.c.h.b16 %v294
        %v428 = vunpack.c.l.b16 %v295
        %v429 = vunpack.c.h.b16 %v295
        %v430 = vunpack.c.l.b16 %v296
        %v431 = vunpack.c.h.b16 %v296
        %v432 = vunpack.c.l.b16 %v297
        %v433 = vunpack.c.h.b16 %v297
        %v434 = vunpack.c.l.b16 %v298
        %v435 = vunpack.c.h.b16 %v298
        %v436 = vunpack.c.l.b16 %v299
        %v437 = vunpack.c.h.b16 %v299
        %v438 = vunpack.c.l.b16 %v300
        %v439 = vunpack.c.h.b16 %v300
        %v440 = vunpack.c.l.b16 %v301
        %v441 = vunpack.c.h.b16 %v301
        %v442 = vunpack.c.l.b16 %v302
        %v443 = vunpack.c.h.b16 %v302
        %v444 = vunpack.c.l.b16 %v303
        %v445 = vunpack.c.h.b16 %v303
        %v446 = vunpack.c.l.b16 %v304
        %v447 = vunpack.c.h.b16 %v304
        %v448 = vunpack.c.l.b16 %v305
        %v449 = vunpack.c.h.b16 %v305
        %v450 = vunpack.c.l.b16 %v306
        %v451 = vunpack.c.h.b16 %v306
        %v452 = vunpack.c.l.b16 %v307
        %v453 = vunpack.c.h.b16 %v307
        %v454 = vunpack.c.l.b16 %v308
        %v455 = vunpack.c.h.b16 %v308
        %v456 = vunpack.c.l.b16 %v309
        %v457 = vunpack.c.h.b16 %v309
        %v458 = vunpack.c.l.b16 %v310
        %v459 = vunpack.c.h.b16 %v310
        %v460 = vunpack.c.l.b16 %v311
        %v461 = vunpack.c.h.b16 %v311
        %v462 = vunpack.c.l.b16 %v312
        %v463 = vunpack.c.h.b16 %v312
        %v464 = vunpack.c.l.b16 %v313
        %v465 = vunpack.c.h.b16 %v313
        %v466 = vunpack.c.l.b16 %v314
        %v467 = vunpack.c.h.b16 %v314
        %v468 = vunpack.c.l.b16 %v315
        %v469 = vunpack.c.h.b16 %v315
        %v470 = vunpack.c.l.b16 %v316
        %v471 = vunpack.c.h.b16 %v316
        %v472 = vunpack.c.l.b16 %v317
        %v473 = vunpack.c.h.b16 %v317
        %v474 = vunpack.c.l.b16 %v318
        %v475 = vunpack.c.h.b16 %v318
        %v476 = vunpack.c.l.b16 %v319
        %v477 = vunpack.c.h.b16 %v319
        %v478 = vunpack.c.l.b16 %v320
        %v479 = vunpack.c.h.b16 %v320
        %v480 = vunpack.c.l.b16 %v321
        %v481 = vunpack.c.h.b16 %v321
        %v482 = vunpack.c.l.b16 %v322
        %v483 = vunpack.c.h.b16 %v322
        %v484 = vunpack.c.l.b16 %v323
        %v485 = vunpack.c.h.b16 %v323
        %v486 = vunpack.c.l.b16 %v324
        %v487 = vunpack.c.h.b16 %v324
        %v488 = vunpack.c.l.b16 %v325
        %v489 = vunpack.c.h.b16 %v325
        %v490 = vunpack.c.l.b16 %v326
        %v491 = vunpack.c.h.b16 %v326
        %v492 = vunpack.c.l.b16 %v327
        %v493 = vunpack.c.h.b16 %v327
        %v494 = vunpack.c.l.b16 %v328
        %v495 = vunpack.c.h.b16 %v328
        %v496 = vunpack.c.l.b16 %v329
        %v497 = vunpack.c.h.b16 %v329
        %v498 = vunpack.c.l.b16 %v330
        %v499 = vunpack.c.h.b16 %v330
        %v500 = vunpack.c.l.b16 %v331
        %v501 = vunpack.c.h.b16 %v331
        %v502 = vunpack.c.l.b16 %v332
        %v503 = vunpack.c.h.b16 %v332
        %v504 = vunpack.c.l.b16 %v333
        %v505 = vunpack.c.h.b16 %v333
        %v506 = vunpack.c.l.b16 %v334
        %v507 = vunpack.c.h.b16 %v334
        %v508 = vunpack.c.l.b16 %v335
        %v509 = vunpack.c.h.b16 %v335
        %v510 = vunpack.c.l.b16 %v336
        %v511 = vunpack.c.h.b16 %v336
        %v512 = vunpack.c.l.b16 %v337
        %v513 = vunpack.c.h.b16 %v337
        %v514 = vunpack.c.l.b16 %v338
        %v515 = vunpack.c.h.b16 %v338
        %v516 = vunpack.c.l.b16 %v339
        %v517 = vunpack.c.h.b16 %v339
        %v518 = vunpack.c.l.b16 %v340
        %v519 = vunpack.c.h.b16 %v340
        %v520 = vunpack.c.l.b16 %v341
        %v521 = vunpack.c.h.b16 %v341
        %v522 = vunpack.c.l.b16 %v342
        %v523 = vunpack.c.h.b16 %v342
        %v524 = vunpack.c.l.b16 %v343
        %v525 = vunpack.c.h.b16 %v343
        %v526 = vunpack.c.l.b16 %v344
        %v527 = vunpack.c.h.b16 %v344
        %v528 = vunpack.c.l.b16 %v345
        %v529 = vunpack.c.h.b16 %v345
        %v530 = vunpack.c.l.b16 %v346
        %v531 = vunpack.c.h.b16 %v346
        %v532 = vunpack.c.l.b16 %v347
        %v533 = vunpack.c.h.b16 %v347
        %v534 = vunpack.c.l.b16 %v348
        %v535 = vunpack.c.h.b16 %v348
        %v536 = vunpack.c.l.b16 %v349
        %v537 = vunpack.c.h.b16 %v349
        %v538 = vunpack.c.l.b16 %v350
        %v539 = vunpack.c.h.b16 %v350
        %v540 = vunpack.c.l.b16 %v351
        %v541 = vunpack.c.h.b16 %v351
        %v542 = vunpack.c.l.b16 %v352
        %v543 = vunpack.c.h.b16 %v352
        %v544 = vunpack.c.l.b16 %v353
        %v545 = vunpack.c.h.b16 %v353
        %v546 = vpack.c.b16 %v422, %v418
        %v547 = vpack.c.b16 %v423, %v419
        %v548 = vpack.c.b16 %v424, %v420
        %v549 = vpack.c.b16 %v425, %v421
        %v550 = vpack.c.b16 %v430, %v426
        %v551 = vpack.c.b16 %v431, %v427
        %v552 = vpack.c.b16 %v432, %v428
        %v553 = vpack.c.b16 %v433, %v429
        %v554 = vpack.c.b16 %v438, %v434
        %v555 = vpack.c.b16 %v439, %v435
        %v556 = vpack.c.b16 %v440, %v436
        %v557 = vpack.c.b16 %v441, %v437
        %v558 = vpack.c.b16 %v446, %v442
        %v559 = vpack.c.b16 %v447, %v443
        %v560 = vpack.c.b16 %v448, %v444
        %v561 = vpack.c.b16 %v449, %v445
        %v562 = vpack.c.b16 %v454, %v450
        %v563 = vpack.c.b16 %v455, %v451
        %v564 = vpack.c.b16 %v456, %v452
        %v565 = vpack.c.b16 %v457, %v453
        %v566 = vpack.c.b16 %v462, %v458
        %v567 = vpack.c.b16 %v463, %v459
        %v568 = vpack.c.b16 %v464, %v460
        %v569 = vpack.c.b16 %v465, %v461
        %v570 = vpack.c.b16 %v470, %v466
        %v571 = vpack.c.b16 %v471, %v467
        %v572 = vpack.c.b16 %v472, %v468
        %v573 = vpack.c.b16 %v473, %v469
        %v574 = vpack.c.b16 %v478, %v474
        %v575 = vpack.c.b16 %v479, %v475
        %v576 = vpack.c.b16 %v480, %v476
        %v577 = vpack.c.b16 %v481, %v477
        %v578 = vpack.c.b16 %v486, %v482
        %v579 = vpack.c.b16 %v487, %v483
        %v580 = vpack.c.b16 %v488, %v484
        %v581 = vpack.c.b16 %v489, %v485
        %v582 = vpack.c.b16 %v494, %v490
        %v583 = vpack.c.b16 %v495, %v491
        %v584 = vpack.c.b16 %v496, %v492
        %v585 = vpack.c.b16 %v497, %v493
        %v586 = vpack.c.b16 %v502, %v498
        %v587 = vpack.c.b16 %v503, %v499
        %v588 = vpack.c.b16 %v504, %v500
        %v589 = vpack.c.b16 %v505, %v501
        %v590 = vpack.c.b16 %v510, %v506
        %v591 = vpack.c.b16 %v511, %v507
        %v592 = vpack.c.b16 %v512, %v508
        %v593 = vpack.c.b16 %v513, %v509
        %v594 = vpack.c.b16 %v518, %v514
        %v595 = vpack.c.b16 %v519, %v515
        %v596 = vpack.c.b16 %v520, %v516
        %v597 = vpack.c.b16 %v521, %v517
        %v598 = vpack.c.b16 %v526, %v522
        %v599 = vpack.c.b16 %v527, %v523
        %v600 = vpack.c.b16 %v528, %v524
        %v601 = vpack.c.b16 %v529, %v525
        %v602 = vpack.c.b16 %v534, %v530
        %v603 = vpack.c.b16 %v535, %v531
        %v604 = vpack.c.b16 %v536, %v532
        %v605 = vpack.c.b16 %v537, %v533
        %v606 = vpack.c.b16 %v542, %v538
        %v607 = vpack.c.b16 %v543, %v539
        %v608 = vpack.c.b16 %v544, %v540
        %v609 = vpack.c.b16 %v545, %v541
        %674 = vmatprep.subr.bf16.mxu0 %v547
        %675 = vmatpush1.bf16.msra.mxu0 %v546
        %676 = vmatprep.subr.bf16.mxu0 %v551
        %677 = vmatpush1.bf16.msra.mxu0 %v550
        %678 = vmatprep.subr.bf16.mxu0 %v555
        %679 = vmatpush1.bf16.msra.mxu0 %v554
        %680 = vmatprep.subr.bf16.mxu0 %v559
        %681 = vmatpush1.bf16.msra.mxu0 %v558
        %682 = vmatprep.subr.bf16.mxu0 %v563
        %683 = vmatpush1.bf16.msra.mxu0 %v562
        %684 = vmatprep.subr.bf16.mxu0 %v567
        %685 = vmatpush1.bf16.msra.mxu0 %v566
        %686 = vmatprep.subr.bf16.mxu0 %v571
        %687 = vmatpush1.bf16.msra.mxu0 %v570
        %688 = vmatprep.subr.bf16.mxu0 %v575
        %689 = vmatpush1.bf16.msra.mxu0 %v574
        %690 = vmatprep.subr.bf16.mxu0 %v579
        %691 = vmatpush1.bf16.msra.mxu0 %v578
        %692 = vmatprep.subr.bf16.mxu0 %v583
        %693 = vmatpush1.bf16.msra.mxu0 %v582
        %694 = vmatprep.subr.bf16.mxu0 %v587
        %695 = vmatpush1.bf16.msra.mxu0 %v586
        %696 = vmatprep.subr.bf16.mxu0 %v591
        %697 = vmatpush1.bf16.msra.mxu0 %v590
        %698 = vmatprep.subr.bf16.mxu0 %v595
        %699 = vmatpush1.bf16.msra.mxu0 %v594
        %700 = vmatprep.subr.bf16.mxu0 %v599
        %701 = vmatpush1.bf16.msra.mxu0 %v598
        %702 = vmatprep.subr.bf16.mxu0 %v603
        %703 = vmatpush1.bf16.msra.mxu0 %v602
        %704 = vmatprep.subr.bf16.mxu0 %v607
        %705 = vmatpush1.bf16.msra.mxu0 %v606
        %706 = vmatprep.mubr.bf16.mxu0 %v219
        %707 = vmatmul.mubr.bf16.gmra.mrb[0].mxu0 %v218
        %v708 = vpop.f32.mrb[0].mxu0
        %v709 = vadd.f32 0.0, %v708
        %v710 = vpop.f32.mrb[0].mxu0
        %v711 = vadd.f32 0.0, %v710
        %v712 = vpop.f32.mrb[0].mxu0
        %v713 = vpop.f32.mrb[0].mxu0
        %714 = vdwg.mxu0
        %715 = vmatprep.subr.bf16.mxu0 %v549
        %716 = vmatpush1.bf16.msra.mxu0 %v548
        %717 = vmatprep.subr.bf16.mxu0 %v553
        %718 = vmatpush1.bf16.msra.mxu0 %v552
        %719 = vmatprep.subr.bf16.mxu0 %v557
        %720 = vmatpush1.bf16.msra.mxu0 %v556
        %721 = vmatprep.subr.bf16.mxu0 %v561
        %722 = vmatpush1.bf16.msra.mxu0 %v560
        %723 = vmatprep.subr.bf16.mxu0 %v565
        %724 = vmatpush1.bf16.msra.mxu0 %v564
        %725 = vmatprep.subr.bf16.mxu0 %v569
        %726 = vmatpush1.bf16.msra.mxu0 %v568
        %727 = vmatprep.subr.bf16.mxu0 %v573
        %728 = vmatpush1.bf16.msra.mxu0 %v572
        %729 = vmatprep.subr.bf16.mxu0 %v577
        %730 = vmatpush1.bf16.msra.mxu0 %v576
        %731 = vmatprep.subr.bf16.mxu0 %v581
        %732 = vmatpush1.bf16.msra.mxu0 %v580
        %733 = vmatprep.subr.bf16.mxu0 %v585
        %734 = vmatpush1.bf16.msra.mxu0 %v584
        %735 = vmatprep.subr.bf16.mxu0 %v589
        %736 = vmatpush1.bf16.msra.mxu0 %v588
        %737 = vmatprep.subr.bf16.mxu0 %v593
        %738 = vmatpush1.bf16.msra.mxu0 %v592
        %739 = vmatprep.subr.bf16.mxu0 %v597
        %740 = vmatpush1.bf16.msra.mxu0 %v596
        %741 = vmatprep.subr.bf16.mxu0 %v601
        %742 = vmatpush1.bf16.msra.mxu0 %v600
        %743 = vmatprep.subr.bf16.mxu0 %v605
        %744 = vmatpush1.bf16.msra.mxu0 %v604
        %745 = vmatprep.subr.bf16.mxu0 %v609
        %746 = vmatpush1.bf16.msra.mxu0 %v608
        %747 = vmatprep.mubr.bf16.mxu0 %v219
        %748 = vmatmul.mubr.bf16.gmra.mrb[0].mxu0 %v218
        %v749 = vpop.f32.mrb[0].mxu0
        %v750 = vadd.f32 0.0, %v749
        %v751 = vpop.f32.mrb[0].mxu0
        %v752 = vadd.f32 0.0, %v751
        %v753 = vpop.f32.mrb[0].mxu0
        %v754 = vpop.f32.mrb[0].mxu0
        %755 = vdwg.mxu0
        %v820 = vunpack.c.l.b16 %v226
        %v821 = vunpack.c.h.b16 %v226
        %v822 = vunpack.c.l.b16 %v227
        %v823 = vunpack.c.h.b16 %v227
        %v824 = vunpack.c.l.b16 %v228
        %v825 = vunpack.c.h.b16 %v228
        %v826 = vunpack.c.l.b16 %v229
        %v827 = vunpack.c.h.b16 %v229
        %v828 = vunpack.c.l.b16 %v230
        %v829 = vunpack.c.h.b16 %v230
        %v830 = vunpack.c.l.b16 %v231
        %v831 = vunpack.c.h.b16 %v231
        %v832 = vunpack.c.l.b16 %v232
        %v833 = vunpack.c.h.b16 %v232
        %v834 = vunpack.c.l.b16 %v233
        %v835 = vunpack.c.h.b16 %v233
        %v836 = vunpack.c.l.b16 %v234
        %v837 = vunpack.c.h.b16 %v234
        %v838 = vunpack.c.l.b16 %v235
        %v839 = vunpack.c.h.b16 %v235
        %v840 = vunpack.c.l.b16 %v236
        %v841 = vunpack.c.h.b16 %v236
        %v842 = vunpack.c.l.b16 %v237
        %v843 = vunpack.c.h.b16 %v237
        %v844 = vunpack.c.l.b16 %v238
        %v845 = vunpack.c.h.b16 %v238
        %v846 = vunpack.c.l.b16 %v239
        %v847 = vunpack.c.h.b16 %v239
        %v848 = vunpack.c.l.b16 %v240
        %v849 = vunpack.c.h.b16 %v240
        %v850 = vunpack.c.l.b16 %v241
        %v851 = vunpack.c.h.b16 %v241
        %v852 = vunpack.c.l.b16 %v242
        %v853 = vunpack.c.h.b16 %v242
        %v854 = vunpack.c.l.b16 %v243
        %v855 = vunpack.c.h.b16 %v243
        %v856 = vunpack.c.l.b16 %v244
        %v857 = vunpack.c.h.b16 %v244
        %v858 = vunpack.c.l.b16 %v245
        %v859 = vunpack.c.h.b16 %v245
        %v860 = vunpack.c.l.b16 %v246
        %v861 = vunpack.c.h.b16 %v246
        %v862 = vunpack.c.l.b16 %v247
        %v863 = vunpack.c.h.b16 %v247
        %v864 = vunpack.c.l.b16 %v248
        %v865 = vunpack.c.h.b16 %v248
        %v866 = vunpack.c.l.b16 %v249
        %v867 = vunpack.c.h.b16 %v249
        %v868 = vunpack.c.l.b16 %v250
        %v869 = vunpack.c.h.b16 %v250
        %v870 = vunpack.c.l.b16 %v251
        %v871 = vunpack.c.h.b16 %v251
        %v872 = vunpack.c.l.b16 %v252
        %v873 = vunpack.c.h.b16 %v252
        %v874 = vunpack.c.l.b16 %v253
        %v875 = vunpack.c.h.b16 %v253
        %v876 = vunpack.c.l.b16 %v254
        %v877 = vunpack.c.h.b16 %v254
        %v878 = vunpack.c.l.b16 %v255
        %v879 = vunpack.c.h.b16 %v255
        %v880 = vunpack.c.l.b16 %v256
        %v881 = vunpack.c.h.b16 %v256
        %v882 = vunpack.c.l.b16 %v257
        %v883 = vunpack.c.h.b16 %v257
        %v884 = vunpack.c.l.b16 %v258
        %v885 = vunpack.c.h.b16 %v258
        %v886 = vunpack.c.l.b16 %v259
        %v887 = vunpack.c.h.b16 %v259
        %v888 = vunpack.c.l.b16 %v260
        %v889 = vunpack.c.h.b16 %v260
        %v890 = vunpack.c.l.b16 %v261
        %v891 = vunpack.c.h.b16 %v261
        %v892 = vunpack.c.l.b16 %v262
        %v893 = vunpack.c.h.b16 %v262
        %v894 = vunpack.c.l.b16 %v263
        %v895 = vunpack.c.h.b16 %v263
        %v896 = vunpack.c.l.b16 %v264
        %v897 = vunpack.c.h.b16 %v264
        %v898 = vunpack.c.l.b16 %v265
        %v899 = vunpack.c.h.b16 %v265
        %v900 = vunpack.c.l.b16 %v266
        %v901 = vunpack.c.h.b16 %v266
        %v902 = vunpack.c.l.b16 %v267
        %v903 = vunpack.c.h.b16 %v267
        %v904 = vunpack.c.l.b16 %v268
        %v905 = vunpack.c.h.b16 %v268
        %v906 = vunpack.c.l.b16 %v269
        %v907 = vunpack.c.h.b16 %v269
        %v908 = vunpack.c.l.b16 %v270
        %v909 = vunpack.c.h.b16 %v270
        %v910 = vunpack.c.l.b16 %v271
        %v911 = vunpack.c.h.b16 %v271
        %v912 = vunpack.c.l.b16 %v272
        %v913 = vunpack.c.h.b16 %v272
        %v914 = vunpack.c.l.b16 %v273
        %v915 = vunpack.c.h.b16 %v273
        %v916 = vunpack.c.l.b16 %v274
        %v917 = vunpack.c.h.b16 %v274
        %v918 = vunpack.c.l.b16 %v275
        %v919 = vunpack.c.h.b16 %v275
        %v920 = vunpack.c.l.b16 %v276
        %v921 = vunpack.c.h.b16 %v276
        %v922 = vunpack.c.l.b16 %v277
        %v923 = vunpack.c.h.b16 %v277
        %v924 = vunpack.c.l.b16 %v278
        %v925 = vunpack.c.h.b16 %v278
        %v926 = vunpack.c.l.b16 %v279
        %v927 = vunpack.c.h.b16 %v279
        %v928 = vunpack.c.l.b16 %v280
        %v929 = vunpack.c.h.b16 %v280
        %v930 = vunpack.c.l.b16 %v281
        %v931 = vunpack.c.h.b16 %v281
        %v932 = vunpack.c.l.b16 %v282
        %v933 = vunpack.c.h.b16 %v282
        %v934 = vunpack.c.l.b16 %v283
        %v935 = vunpack.c.h.b16 %v283
        %v936 = vunpack.c.l.b16 %v284
        %v937 = vunpack.c.h.b16 %v284
        %v938 = vunpack.c.l.b16 %v285
        %v939 = vunpack.c.h.b16 %v285
        %v940 = vunpack.c.l.b16 %v286
        %v941 = vunpack.c.h.b16 %v286
        %v942 = vunpack.c.l.b16 %v287
        %v943 = vunpack.c.h.b16 %v287
        %v944 = vunpack.c.l.b16 %v288
        %v945 = vunpack.c.h.b16 %v288
        %v946 = vunpack.c.l.b16 %v289
        %v947 = vunpack.c.h.b16 %v289
        %v948 = vpack.c.b16 %v824, %v820
        %v949 = vpack.c.b16 %v825, %v821
        %v950 = vpack.c.b16 %v826, %v822
        %v951 = vpack.c.b16 %v827, %v823
        %v952 = vpack.c.b16 %v832, %v828
        %v953 = vpack.c.b16 %v833, %v829
        %v954 = vpack.c.b16 %v834, %v830
        %v955 = vpack.c.b16 %v835, %v831
        %v956 = vpack.c.b16 %v840, %v836
        %v957 = vpack.c.b16 %v841, %v837
        %v958 = vpack.c.b16 %v842, %v838
        %v959 = vpack.c.b16 %v843, %v839
        %v960 = vpack.c.b16 %v848, %v844
        %v961 = vpack.c.b16 %v849, %v845
        %v962 = vpack.c.b16 %v850, %v846
        %v963 = vpack.c.b16 %v851, %v847
        %v964 = vpack.c.b16 %v856, %v852
        %v965 = vpack.c.b16 %v857, %v853
        %v966 = vpack.c.b16 %v858, %v854
        %v967 = vpack.c.b16 %v859, %v855
        %v968 = vpack.c.b16 %v864, %v860
        %v969 = vpack.c.b16 %v865, %v861
        %v970 = vpack.c.b16 %v866, %v862
        %v971 = vpack.c.b16 %v867, %v863
        %v972 = vpack.c.b16 %v872, %v868
        %v973 = vpack.c.b16 %v873, %v869
        %v974 = vpack.c.b16 %v874, %v870
        %v975 = vpack.c.b16 %v875, %v871
        %v976 = vpack.c.b16 %v880, %v876
        %v977 = vpack.c.b16 %v881, %v877
        %v978 = vpack.c.b16 %v882, %v878
        %v979 = vpack.c.b16 %v883, %v879
        %v980 = vpack.c.b16 %v888, %v884
        %v981 = vpack.c.b16 %v889, %v885
        %v982 = vpack.c.b16 %v890, %v886
        %v983 = vpack.c.b16 %v891, %v887
        %v984 = vpack.c.b16 %v896, %v892
        %v985 = vpack.c.b16 %v897, %v893
        %v986 = vpack.c.b16 %v898, %v894
        %v987 = vpack.c.b16 %v899, %v895
        %v988 = vpack.c.b16 %v904, %v900
        %v989 = vpack.c.b16 %v905, %v901
        %v990 = vpack.c.b16 %v906, %v902
        %v991 = vpack.c.b16 %v907, %v903
        %v992 = vpack.c.b16 %v912, %v908
        %v993 = vpack.c.b16 %v913, %v909
        %v994 = vpack.c.b16 %v914, %v910
        %v995 = vpack.c.b16 %v915, %v911
        %v996 = vpack.c.b16 %v920, %v916
        %v997 = vpack.c.b16 %v921, %v917
        %v998 = vpack.c.b16 %v922, %v918
        %v999 = vpack.c.b16 %v923, %v919
        %v1000 = vpack.c.b16 %v928, %v924
        %v1001 = vpack.c.b16 %v929, %v925
        %v1002 = vpack.c.b16 %v930, %v926
        %v1003 = vpack.c.b16 %v931, %v927
        %v1004 = vpack.c.b16 %v936, %v932
        %v1005 = vpack.c.b16 %v937, %v933
        %v1006 = vpack.c.b16 %v938, %v934
        %v1007 = vpack.c.b16 %v939, %v935
        %v1008 = vpack.c.b16 %v944, %v940
        %v1009 = vpack.c.b16 %v945, %v941
        %v1010 = vpack.c.b16 %v946, %v942
        %v1011 = vpack.c.b16 %v947, %v943
        %1076 = vmatprep.subr.bf16.mxu0 %v949
        %1077 = vmatpush1.bf16.msra.mxu0 %v948
        %1078 = vmatprep.subr.bf16.mxu0 %v953
        %1079 = vmatpush1.bf16.msra.mxu0 %v952
        %1080 = vmatprep.subr.bf16.mxu0 %v957
        %1081 = vmatpush1.bf16.msra.mxu0 %v956
        %1082 = vmatprep.subr.bf16.mxu0 %v961
        %1083 = vmatpush1.bf16.msra.mxu0 %v960
        %1084 = vmatprep.subr.bf16.mxu0 %v965
        %1085 = vmatpush1.bf16.msra.mxu0 %v964
        %1086 = vmatprep.subr.bf16.mxu0 %v969
        %1087 = vmatpush1.bf16.msra.mxu0 %v968
        %1088 = vmatprep.subr.bf16.mxu0 %v973
        %1089 = vmatpush1.bf16.msra.mxu0 %v972
        %1090 = vmatprep.subr.bf16.mxu0 %v977
        %1091 = vmatpush1.bf16.msra.mxu0 %v976
        %1092 = vmatprep.subr.bf16.mxu0 %v981
        %1093 = vmatpush1.bf16.msra.mxu0 %v980
        %1094 = vmatprep.subr.bf16.mxu0 %v985
        %1095 = vmatpush1.bf16.msra.mxu0 %v984
        %1096 = vmatprep.subr.bf16.mxu0 %v989
        %1097 = vmatpush1.bf16.msra.mxu0 %v988
        %1098 = vmatprep.subr.bf16.mxu0 %v993
        %1099 = vmatpush1.bf16.msra.mxu0 %v992
        %1100 = vmatprep.subr.bf16.mxu0 %v997
        %1101 = vmatpush1.bf16.msra.mxu0 %v996
        %1102 = vmatprep.subr.bf16.mxu0 %v1001
        %1103 = vmatpush1.bf16.msra.mxu0 %v1000
        %1104 = vmatprep.subr.bf16.mxu0 %v1005
        %1105 = vmatpush1.bf16.msra.mxu0 %v1004
        %1106 = vmatprep.subr.bf16.mxu0 %v1009
        %1107 = vmatpush1.bf16.msra.mxu0 %v1008
        %1108 = vmatprep.mubr.bf16.mxu0 %v219
        %1109 = vmatmul.mubr.bf16.gmra.mrb[0].mxu0 %v218
        %v1110 = vpop.f32.mrb[0].mxu0
        %v1111 = vadd.f32 %v709, %v1110
        %v1112 = vpop.f32.mrb[0].mxu0
        %v1113 = vadd.f32 %v711, %v1112
        %v1114 = vpop.f32.mrb[0].mxu0
        %v1115 = vpop.f32.mrb[0].mxu0
        %1116 = vdwg.mxu0
        %1117 = vmatprep.subr.bf16.mxu0 %v951
        %1118 = vmatpush1.bf16.msra.mxu0 %v950
        %1119 = vmatprep.subr.bf16.mxu0 %v955
        %1120 = vmatpush1.bf16.msra.mxu0 %v954
        %1121 = vmatprep.subr.bf16.mxu0 %v959
        %1122 = vmatpush1.bf16.msra.mxu0 %v958
        %1123 = vmatprep.subr.bf16.mxu0 %v963
        %1124 = vmatpush1.bf16.msra.mxu0 %v962
        %1125 = vmatprep.subr.bf16.mxu0 %v967
        %1126 = vmatpush1.bf16.msra.mxu0 %v966
        %1127 = vmatprep.subr.bf16.mxu0 %v971
        %1128 = vmatpush1.bf16.msra.mxu0 %v970
        %1129 = vmatprep.subr.bf16.mxu0 %v975
        %1130 = vmatpush1.bf16.msra.mxu0 %v974
        %1131 = vmatprep.subr.bf16.mxu0 %v979
        %1132 = vmatpush1.bf16.msra.mxu0 %v978
        %1133 = vmatprep.subr.bf16.mxu0 %v983
        %1134 = vmatpush1.bf16.msra.mxu0 %v982
        %1135 = vmatprep.subr.bf16.mxu0 %v987
        %1136 = vmatpush1.bf16.msra.mxu0 %v986
        %1137 = vmatprep.subr.bf16.mxu0 %v991
        %1138 = vmatpush1.bf16.msra.mxu0 %v990
        %1139 = vmatprep.subr.bf16.mxu0 %v995
        %1140 = vmatpush1.bf16.msra.mxu0 %v994
        %1141 = vmatprep.subr.bf16.mxu0 %v999
        %1142 = vmatpush1.bf16.msra.mxu0 %v998
        %1143 = vmatprep.subr.bf16.mxu0 %v1003
        %1144 = vmatpush1.bf16.msra.mxu0 %v1002
        %1145 = vmatprep.subr.bf16.mxu0 %v1007
        %1146 = vmatpush1.bf16.msra.mxu0 %v1006
        %1147 = vmatprep.subr.bf16.mxu0 %v1011
        %1148 = vmatpush1.bf16.msra.mxu0 %v1010
        %1149 = vmatprep.mubr.bf16.mxu0 %v219
        %1150 = vmatmul.mubr.bf16.gmra.mrb[0].mxu0 %v218
        %v1151 = vpop.f32.mrb[0].mxu0
        %v1152 = vadd.f32 %v750, %v1151
        %v1153 = vpop.f32.mrb[0].mxu0
        %v1154 = vadd.f32 %v752, %v1153
        %v1155 = vpop.f32.mrb[0].mxu0
        %v1156 = vpop.f32.mrb[0].mxu0
        %1157 = vdwg.mxu0
        %1158 = vmatprep.subr.bf16.mxu0 %v949
        %1159 = vmatpush1.bf16.msra.mxu0 %v948
        %1160 = vmatprep.subr.bf16.mxu0 %v953
        %1161 = vmatpush1.bf16.msra.mxu0 %v952
        %1162 = vmatprep.subr.bf16.mxu0 %v957
        %1163 = vmatpush1.bf16.msra.mxu0 %v956
        %1164 = vmatprep.subr.bf16.mxu0 %v961
        %1165 = vmatpush1.bf16.msra.mxu0 %v960
        %1166 = vmatprep.subr.bf16.mxu0 %v965
        %1167 = vmatpush1.bf16.msra.mxu0 %v964
        %1168 = vmatprep.subr.bf16.mxu0 %v969
        %1169 = vmatpush1.bf16.msra.mxu0 %v968
        %1170 = vmatprep.subr.bf16.mxu0 %v973
        %1171 = vmatpush1.bf16.msra.mxu0 %v972
        %1172 = vmatprep.subr.bf16.mxu0 %v977
        %1173 = vmatpush1.bf16.msra.mxu0 %v976
        %1174 = vmatprep.subr.bf16.mxu0 %v981
        %1175 = vmatpush1.bf16.msra.mxu0 %v980
        %1176 = vmatprep.subr.bf16.mxu0 %v985
        %1177 = vmatpush1.bf16.msra.mxu0 %v984
        %1178 = vmatprep.subr.bf16.mxu0 %v989
        %1179 = vmatpush1.bf16.msra.mxu0 %v988
        %1180 = vmatprep.subr.bf16.mxu0 %v993
        %1181 = vmatpush1.bf16.msra.mxu0 %v992
        %1182 = vmatprep.subr.bf16.mxu0 %v997
        %1183 = vmatpush1.bf16.msra.mxu0 %v996
        %1184 = vmatprep.subr.bf16.mxu0 %v1001
        %1185 = vmatpush1.bf16.msra.mxu0 %v1000
        %1186 = vmatprep.subr.bf16.mxu0 %v1005
        %1187 = vmatpush1.bf16.msra.mxu0 %v1004
        %1188 = vmatprep.subr.bf16.mxu0 %v1009
        %1189 = vmatpush1.bf16.msra.mxu0 %v1008
        %1190 = vmatprep.mubr.bf16.mxu0 %v225
        %1191 = vmatmul.mubr.bf16.gmra.mrb[0].mxu0 %v224
        %v1192 = vpop.f32.mrb[0].mxu0
        %v1193 = vadd.f32 0.0, %v1192
        %v1194 = vpop.f32.mrb[0].mxu0
        %v1195 = vadd.f32 0.0, %v1194
        %v1196 = vpop.f32.mrb[0].mxu0
        %v1197 = vpop.f32.mrb[0].mxu0
        %1198 = vdwg.mxu0
        %1199 = vmatprep.subr.bf16.mxu0 %v951
        %1200 = vmatpush1.bf16.msra.mxu0 %v950
        %1201 = vmatprep.subr.bf16.mxu0 %v955
        %1202 = vmatpush1.bf16.msra.mxu0 %v954
        %1203 = vmatprep.subr.bf16.mxu0 %v959
        %1204 = vmatpush1.bf16.msra.mxu0 %v958
        %1205 = vmatprep.subr.bf16.mxu0 %v963
        %1206 = vmatpush1.bf16.msra.mxu0 %v962
        %1207 = vmatprep.subr.bf16.mxu0 %v967
        %1208 = vmatpush1.bf16.msra.mxu0 %v966
        %1209 = vmatprep.subr.bf16.mxu0 %v971
        %1210 = vmatpush1.bf16.msra.mxu0 %v970
        %1211 = vmatprep.subr.bf16.mxu0 %v975
        %1212 = vmatpush1.bf16.msra.mxu0 %v974
        %1213 = vmatprep.subr.bf16.mxu0 %v979
        %1214 = vmatpush1.bf16.msra.mxu0 %v978
        %1215 = vmatprep.subr.bf16.mxu0 %v983
        %1216 = vmatpush1.bf16.msra.mxu0 %v982
        %1217 = vmatprep.subr.bf16.mxu0 %v987
        %1218 = vmatpush1.bf16.msra.mxu0 %v986
        %1219 = vmatprep.subr.bf16.mxu0 %v991
        %1220 = vmatpush1.bf16.msra.mxu0 %v990
        %1221 = vmatprep.subr.bf16.mxu0 %v995
        %1222 = vmatpush1.bf16.msra.mxu0 %v994
        %1223 = vmatprep.subr.bf16.mxu0 %v999
        %1224 = vmatpush1.bf16.msra.mxu0 %v998
        %1225 = vmatprep.subr.bf16.mxu0 %v1003
        %1226 = vmatpush1.bf16.msra.mxu0 %v1002
        %1227 = vmatprep.subr.bf16.mxu0 %v1007
        %1228 = vmatpush1.bf16.msra.mxu0 %v1006
        %1229 = vmatprep.subr.bf16.mxu0 %v1011
        %1230 = vmatpush1.bf16.msra.mxu0 %v1010
        %1231 = vmatprep.mubr.bf16.mxu0 %v225
        %1232 = vmatmul.mubr.bf16.gmra.mrb[0].mxu0 %v224
        %v1233 = vpop.f32.mrb[0].mxu0
        %v1234 = vadd.f32 0.0, %v1233
        %v1235 = vpop.f32.mrb[0].mxu0
        %v1236 = vadd.f32 0.0, %v1235
        %v1237 = vpop.f32.mrb[0].mxu0
        %v1238 = vpop.f32.mrb[0].mxu0
        %1239 = vdwg.mxu0
        %v1240 = vadd.f32 %v1111, %v1193
        %v1241 = vadd.f32 %v1113, %v1195
        %v1242 = vadd.f32 %v1152, %v1234
        %v1243 = vadd.f32 %v1154, %v1236
        %v1244 = vmul.f32 %v1240, %v1240
        %v1245 = vmul.f32 %v1241, %v1241
        %v1246 = vmul.f32 %v1242, %v1242
        %v1247 = vmul.f32 %v1243, %v1243
        %v1248 = vadd.f32 %v1244, %v1246
        %v1249 = vadd.f32 %v1245, %v1247
        %v1250 = vrsqrt.pop %v1248
        %v1251 = vmul.f32 %v1248, %v1250
        %vm1252 = vcmp.eq.f32.partialorder %v1248, inf
        %v1253 = vsel %vm1252, %v1248, %v1251
        %vm1254 = vcmp.eq.f32.partialorder %v1248, 0.0
        %v1255 = vand.u32 %v1248, 2147483648
        %v1256 = vsel %vm1254, %v1255, %v1253
        %v1257 = vrsqrt.pop %v1249
        %v1258 = vmul.f32 %v1249, %v1257
        %vm1259 = vcmp.eq.f32.partialorder %v1249, inf
        %v1260 = vsel %vm1259, %v1249, %v1258
        %vm1261 = vcmp.eq.f32.partialorder %v1249, 0.0
        %v1262 = vand.u32 %v1249, 2147483648
        %v1263 = vsel %vm1261, %v1262, %v1260
        %1264 = vst [vmem:[%s215] sm:$0xff] %v1256
        %1265 = vst [vmem:[%s215 + $0x8] sm:$0xff] %v1263
        %s1266 = sand.u32 %s97, 1
        %s1267 = scalar_lea.sflag [#allocation4], %s1266
        %s1268 = sand.u32 %s97, 1
        %s1269 = smul.addr %s1268, 16
        %s1270 = scalar_lea.vmem [#allocation8], %s1269
        // Predicated region
        $region45: #{tpu_custom_call.1} parent=31 // pred_check
          %p1271 = pneg %p107
        $region46: #{tpu_custom_call.1} parent=31 // pred_check_branch
          %1273 = sbr.rel (%p1271) target = $region48
        $region47: #{tpu_custom_call.1} parent=31 // pred_region
          %s1275 = ssub.s32 256, 256
          %1276 = vsyncadd %s1267, %s1275
          %s1277 = smul.addr %s21, 2
          %s1278 = smul.addr %s1277, 128
          %s1279 = scalar_lea.hbm %s3, %s1278
          %s1281 = sshll.u32 %s1270, 4
          %s1282 = int_to_ptr.vmem [resolvable:$true] %s1281
          %1284 = dma.vmem_to_hbm [thread:$0]  %s1282, 256, %s1279, %s1267
        $region48: #{tpu_custom_call.1} parent=31 // pred_fallthru
          _
      $region32: #{tpu_custom_call.1} parent=5 // pred_fallthru
        _
      %p1285 = scmp.le.s32.totalorder 2, %s16
      // Predicated region
      $region49: #{tpu_custom_call.1} parent=5 // pred_check
        %p1286 = pneg %p1285
      $region50: #{tpu_custom_call.1} parent=5 // pred_check_branch
        %1288 = sbr.rel (%p1286) target = $region52
      $region51: #{tpu_custom_call.1} parent=5 // pred_region
        %s1289 = ssub.s32 %s16, 2
        // Predicated region
        $region53: #{tpu_custom_call.1} parent=51 // pred_check
          %p1290 = pneg %p113
        $region54: #{tpu_custom_call.1} parent=51 // pred_check_branch
          %1292 = sbr.rel (%p1290) target = $region56
        $region55: #{tpu_custom_call.1} parent=51 // pred_region
          %s1293 = sand.u32 %s98, 1
          %s1294 = scalar_lea.sflag [#allocation4], %s1293
          %s1295 = sand.u32 %s98, 1
          %s1296 = smul.addr %s1295, 16
          %s1297 = scalar_lea.vmem [#allocation8], %s1296
          %1298 = dma.done %s1294, 256
        $region56: #{tpu_custom_call.1} parent=51 // pred_fallthru
          _
      $region52: #{tpu_custom_call.1} parent=5 // pred_fallthru
        _
    $region6: #{tpu_custom_call.1} parent=1 // loop_footer
      %s20 = sadd.s32 1, %s16
    $region7: #{tpu_custom_call.1} parent=1 // loop_footer_branch
      %15 = sbr.rel target = $region3
    $region8: #{tpu_custom_call.1} parent=1 // loop_exit
      _
    %1299 = vsyncpa [#allocation3], 1
    %s1300 = scalar_lea.sflag [#allocation3], 1
    %1301 = vsyncpa %s1300, 1
    %1302 = vsyncpa [#allocation6], 1
    %1303 = vsyncpa [#allocation4], 1
    %s1304 = scalar_lea.sflag [#allocation4], 1
    %1305 = vsyncpa %s1304, 1

</llo_original>
